<compile_context>
chip_gen: v7x
topology: tpu7x:2x2x1
jax: 0.10.0
libtpu: 0.0.40
codegen_flags: <defaults>
</compile_context>

<pallas_src>
import jax
import jax.numpy as jnp
from jax import lax
from jax.experimental import pallas as pl
from jax.experimental.pallas import tpu as pltpu

_LANE = 128
_SUBLANE = 8
_EPS = 1e-4
_TILE_BYTES = 4 * 1024 * 1024          # target bytes for one padded f32 tile
_VMEM_LIMIT = 32 * 1024 * 1024         # safe on v5e/v6e (128 MiB) and v7x (64 MiB)


def _round_up(a: int, b: int) -> int:
    return (a + b - 1) // b * b


def sobel_layer(x, *, tile_bytes: int = _TILE_BYTES):
    """x: (N, 1, H, W) float -> (N, 1, H+1, W+1), matching SobelLayer.forward."""
    n, c, h, w = x.shape
    assert c == 1, "SobelLayer conv weight has in_channels=1"
    b = n
    xb = x.reshape(b, h, w)                 # metadata-only reshape
    in_bytes = x.dtype.itemsize

    cq = _round_up(w + 1, _LANE)            # lane-dense padded width
    rq_img = _round_up(h + 1, _SUBLANE)     # padded height of one image slab
    img_bytes = rq_img * cq * 4

    if img_bytes <= tile_bytes or h < _SUBLANE:
        # ---- fast path: whole image(s) per tile, no cross-tile carry ----
        rq = rq_img
        cap = tile_bytes // max(img_bytes, 1)
        if b > 1:
            cap = min(cap, -(-b // 2))      # keep >= 2 blocks so megacore can split
        cap = max(1, cap)
        tb = 1
        for d in range(min(b, cap), 0, -1): # largest divisor of b under the budget
            if b % d == 0:
                tb = d
                break
        nb = b // tb
        rows = tb * rq

        def _tile(x_ref, qbuf):
            # Build the zero-padded lane-dense tile in VMEM: image data plus the
            # right-column and bottom-row zero strips (the conv's zero padding).
            qbuf[:, :h, :w] = x_ref[...].astype(jnp.float32)
            qbuf[:, :, w:] = jnp.zeros((tb, rq, cq - w), jnp.float32)
            qbuf[:, h:, :] = jnp.zeros((tb, rq - h, cq), jnp.float32)
            q = qbuf[...].reshape(rows, cq)     # rq % 8 == 0 -> layout-free reshape
            # Horizontal diff: lane cq-1 is zero padding -> left border via wrap.
            gx = jnp.abs(q - pltpu.roll(q, shift=1, axis=1))
            # Vertical diff: each image's last slab row is zero padding, so the
            # sublane wrap supplies each image's zero top border for free.
            gy = jnp.abs(q - pltpu.roll(q, shift=1, axis=0))
            return gx, gy

        def _minmax_kernel(x_ref, mm_ref, qbuf):
            gx, gy = _tile(x_ref, qbuf)
            mm_ref[0] = jnp.concatenate(
                [jnp.max(gx, axis=0, keepdims=True),
                 jnp.max(gy, axis=0, keepdims=True)], axis=0)

        def _norm_kernel(x_ref, s_ref, o_ref, qbuf):
            gx, gy = _tile(x_ref, qbuf)
            o_ref[...] = (gx * s_ref[0] + gy * s_ref[1]).reshape(
                tb, rq, cq).astype(o_ref.dtype)

        grid = (nb,)
        x_spec = pl.BlockSpec((tb, h, w), lambda i: (i, 0, 0))
        scratch = [pltpu.VMEM((tb, rq, cq), jnp.float32)]
        sem = ("parallel",)                 # whole images per step -> independent
        mm_shape = jax.ShapeDtypeStruct((nb, 2, cq), jnp.float32)
        mm_spec = pl.BlockSpec((1, 2, cq), lambda i: (i, 0, 0))
        o_shape = jax.ShapeDtypeStruct((b, rq, cq), x.dtype)
        o_spec = pl.BlockSpec((tb, rq, cq), lambda i: (i, 0, 0))
        slab_rows = rq

    else:
        # ---- tiled path: (batch, row-tile) grid with a 1-row vertical carry ----
        tr = max(_SUBLANE, (tile_bytes // (cq * 4)) // _SUBLANE * _SUBLANE)
        tr = min(tr, (h // _SUBLANE) * _SUBLANE)   # x row-blocks stay inside H
        rq = _round_up(h + 1, tr)
        nr = rq // tr                              # >= 2 in this branch
        nxb = -(-h // tr)                          # number of row-blocks of x

        def _tile(x_ref, qbuf, carry_ref, j):
            # Copy this row-tile of x and zero-pad the lanes [w, cq).
            qbuf[:, :w] = x_ref[0].astype(jnp.float32)
            qbuf[:, w:] = jnp.zeros((tr, cq - w), jnp.float32)

            # Rows at/under the image bottom (the partial last tile and the
            # all-padding tile holding output row H) must be zero.
            @pl.when((j + 1) * tr > h)
            def _():
                rows = j * tr + lax.broadcasted_iota(jnp.int32, (tr, cq), 0)
                qbuf[...] = jnp.where(rows < h, qbuf[...], 0.0)

            q = qbuf[...]
            # Horizontal diff (lane cq-1 is zero padding -> left border via wrap).
            gx = jnp.abs(q - pltpu.roll(q, shift=1, axis=1))
            # Vertical diff: sublane roll + fix row 0 with the row carried over
            # from the previous tile (zero at the top of each image).
            q_up = pltpu.roll(q, shift=1, axis=0)
            row0 = lax.broadcasted_iota(jnp.int32, (tr, cq), 0) == 0
            q_up = jnp.where(row0, carry_ref[...], q_up)
            gy = jnp.abs(q - q_up)
            carry_ref[...] = q[tr - 1:tr, :]       # last (already masked) row
            return gx, gy

        def _minmax_kernel(x_ref, mm_ref, qbuf, carry_ref):
            j = pl.program_id(1)

            @pl.when(j == 0)
            def _():                               # top of a new image
                carry_ref[...] = jnp.zeros_like(carry_ref)

            gx, gy = _tile(x_ref, qbuf, carry_ref, j)
            part = jnp.concatenate(
                [jnp.max(gx, axis=0, keepdims=True),
                 jnp.max(gy, axis=0, keepdims=True)], axis=0)

            @pl.when(j == 0)
            def _():
                mm_ref[0] = part

            @pl.when(j > 0)
            def _():
                mm_ref[0] = jnp.maximum(mm_ref[0], part)

        def _norm_kernel(x_ref, s_ref, o_ref, qbuf, carry_ref):
            j = pl.program_id(1)

            @pl.when(j == 0)
            def _():
                carry_ref[...] = jnp.zeros_like(carry_ref)

            gx, gy = _tile(x_ref, qbuf, carry_ref, j)
            o_ref[0] = (gx * s_ref[0] + gy * s_ref[1]).astype(o_ref.dtype)

        grid = (b, nr)
        # Row blocks past the image bottom are clamped to the last valid x block;
        # their contents are fully masked to zero above, so the duplicate read is
        # inert (and usually skipped, since the block index does not change).
        x_spec = pl.BlockSpec((1, tr, w),
                              lambda i, j: (i, jnp.minimum(j, nxb - 1), 0))
        scratch = [pltpu.VMEM((tr, cq), jnp.float32),
                   pltpu.VMEM((1, cq), jnp.float32)]
        # Batch axis "parallel" (per-image accumulator + per-image carry reset at
        # j == 0 keep it safe on v7x's two TensorCores); the row axis carries the
        # 1-row dependency and the running max -> it must stay "arbitrary".
        sem = ("parallel", "arbitrary")
        mm_shape = jax.ShapeDtypeStruct((b, 2, cq), jnp.float32)
        mm_spec = pl.BlockSpec((1, 2, cq), lambda i, j: (i, 0, 0))
        o_shape = jax.ShapeDtypeStruct((b, rq, cq), x.dtype)
        o_spec = pl.BlockSpec((1, tr, cq), lambda i, j: (i, j, 0))
        slab_rows = rq

    slab_elems = b * slab_rows * cq
    smem_spec = pl.BlockSpec(memory_space=pltpu.MemorySpace.SMEM)

    # ---- pass 1: per-image, per-lane maxima of gx / gy (final reduce in XLA) ----
    mm = pl.pallas_call(
        _minmax_kernel,
        out_shape=mm_shape,
        grid=grid,
        in_specs=[x_spec],
        out_specs=mm_spec,
        scratch_shapes=scratch,
        compiler_params=pltpu.CompilerParams(
            dimension_semantics=sem, vmem_limit_bytes=_VMEM_LIMIT),
        cost_estimate=pl.CostEstimate(
            flops=8 * slab_elems, transcendentals=0,
            bytes_accessed=xb.size * in_bytes + mm_shape.shape[0] * 2 * cq * 4),
    )(xb)

    # gx's bottom row / gy's right column are exactly zero (conv zero padding),
    # so the global minima are exactly 0 and only the maxima are needed.
    gx_max = jnp.max(mm[:, 0, :])
    gy_max = jnp.max(mm[:, 1, :])
    scal = jnp.stack([1.0 / (gx_max + _EPS),
                      1.0 / (gy_max + _EPS)]).astype(jnp.float32)

    # ---- pass 2: recompute the gradients, apply the hoisted normalisation ----
    out_pad = pl.pallas_call(
        _norm_kernel,
        out_shape=o_shape,
        grid=grid,
        in_specs=[x_spec, smem_spec],
        out_specs=o_spec,
        scratch_shapes=scratch,
        compiler_params=pltpu.CompilerParams(
            dimension_semantics=sem, vmem_limit_bytes=_VMEM_LIMIT),
        cost_estimate=pl.CostEstimate(
            flops=10 * slab_elems, transcendentals=0,
            bytes_accessed=xb.size * in_bytes + slab_elems * x.dtype.itemsize),
    )(xb, scal)

    # Valid region is (H+1, W+1); keep the lane-dense store + slice (W+1 here is
    # far below a lane multiple, so direct masked stores would be slower).
    return out_pad[:, :h + 1, :w + 1].reshape(n, 1, h + 1, w + 1)


def _sobel_reference(x):
    """Pure-JAX reference mirroring the PyTorch semantics (for verification)."""
    xp = jnp.pad(x, ((0, 0), (0, 0), (1, 1), (1, 1)))
    gx = jnp.abs(xp[:, :, 1:, 1:] - xp[:, :, 1:, :-1])
    gy = jnp.abs(xp[:, :, 1:, 1:] - xp[:, :, :-1, 1:])
    gxn = (gx - jnp.min(gx)) / (jnp.max(gx) - jnp.min(gx) + 0.0001)
    gyn = (gy - jnp.min(gy)) / (jnp.max(gy) - jnp.min(gy) + 0.0001)
    return gxn + gyn


if __name__ == "__main__":
    key = jax.random.PRNGKey(0)
    x = jax.random.normal(key, (2, 1, 16, 16), dtype=jnp.float32)

    fwd = jax.jit(sobel_layer, static_argnames="tile_bytes")

    out = jax.block_until_ready(fwd(x))
    ref = _sobel_reference(x)
    assert out.shape == (2, 1, 17, 17), out.shape
    assert jnp.allclose(out, ref, atol=1e-5, rtol=1e-5)

    # Exercise the row-tiled path (per-image running max, clamped ragged x
    # blocks, partial-row masking and the 1-row carry) by shrinking the tile
    # budget below one image slab.
    x2 = jax.random.normal(jax.random.PRNGKey(1), (2, 1, 41, 24), dtype=jnp.float32)
    out2 = jax.block_until_ready(fwd(x2, tile_bytes=8 * 128 * 4))
    assert out2.shape == (2, 1, 42, 25), out2.shape
    assert jnp.allclose(out2, _sobel_reference(x2), atol=1e-5, rtol=1e-5)

    print("KERNEL_OK")
</pallas_src>

<mosaic_0001>
module attributes {stable_mosaic.version = 11 : i64} {
  func.func @_norm_kernel(%arg0: i32, %arg1: memref<1x16x16xf32, #tpu.memory_space<vmem>>, %arg2: memref<2xf32, #tpu.memory_space<smem>>, %arg3: memref<1x24x128xf32, #tpu.memory_space<vmem>>, %arg4: memref<1x24x128xf32, #tpu.memory_space<vmem>>) attributes {dimension_semantics = [#tpu.dimension_semantics<parallel>], iteration_bounds = array<i64: 2>, scalar_prefetch = 0 : i64, scratch_operands = 1 : i64, tpu.core_type = #tpu.core_type<tc>, window_params = [{transform_indices = @transform_0, window_bounds = array<i64: 1, 16, 16>}, {transform_indices = @transform_1, window_bounds = array<i64: 2>}, {transform_indices = @transform_2, window_bounds = array<i64: 1, 24, 128>}]} {
    %c0 = arith.constant 0 : index
    %c0_0 = arith.constant 0 : index
    %c0_1 = arith.constant 0 : index
    %0 = vector.load %arg1[%c0, %c0_0, %c0_1] : memref<1x16x16xf32, #tpu.memory_space<vmem>>, vector<1x16x16xf32>
    %c0_2 = arith.constant 0 : index
    %c0_3 = arith.constant 0 : index
    %c0_4 = arith.constant 0 : index
    %1 = vector.load %arg4[%c0_2, %c0_3, %c0_4] : memref<1x24x128xf32, #tpu.memory_space<vmem>>, vector<1x16x16xf32>
    tpu.vector_store %arg4[%c0_2, %c0_3, %c0_4], %0 {strides = array<i32>} : memref<1x24x128xf32, #tpu.memory_space<vmem>>, vector<1x16x16xf32>,
    %cst = arith.constant 0.000000e+00 : f32
    %2 = vector.broadcast %cst : f32 to vector<1x24x112xf32>
    %c0_5 = arith.constant 0 : index
    %c0_6 = arith.constant 0 : index
    %c16 = arith.constant 16 : index
    %3 = vector.load %arg4[%c0_5, %c0_6, %c16] : memref<1x24x128xf32, #tpu.memory_space<vmem>>, vector<1x24x112xf32>
    tpu.vector_store %arg4[%c0_5, %c0_6, %c16], %2 {strides = array<i32>} : memref<1x24x128xf32, #tpu.memory_space<vmem>>, vector<1x24x112xf32>,
    %cst_7 = arith.constant 0.000000e+00 : f32
    %4 = vector.broadcast %cst_7 : f32 to vector<1x8x128xf32>
    %c0_8 = arith.constant 0 : index
    %c16_9 = arith.constant 16 : index
    %c0_10 = arith.constant 0 : index
    %5 = vector.load %arg4[%c0_8, %c16_9, %c0_10] : memref<1x24x128xf32, #tpu.memory_space<vmem>>, vector<1x8x128xf32>
    tpu.vector_store %arg4[%c0_8, %c16_9, %c0_10], %4 {strides = array<i32>} : memref<1x24x128xf32, #tpu.memory_space<vmem>>, vector<1x8x128xf32>,
    %c0_11 = arith.constant 0 : index
    %c0_12 = arith.constant 0 : index
    %c0_13 = arith.constant 0 : index
    %6 = vector.load %arg4[%c0_11, %c0_12, %c0_13] : memref<1x24x128xf32, #tpu.memory_space<vmem>>, vector<1x24x128xf32>
    %7 = vector.shape_cast %6 : vector<1x24x128xf32> to vector<24x128xf32>
    %c1_i32 = arith.constant 1 : i32
    %8 = tpu.dynamic_rotate %7 by %c1_i32 dim 1 : vector<24x128xf32>, i32 -> vector<24x128xf32>
    %9 = arith.subf %7, %8 : vector<24x128xf32>
    %10 = math.absf %9 : vector<24x128xf32>
    %c1_i32_14 = arith.constant 1 : i32
    %11 = tpu.dynamic_rotate %7 by %c1_i32_14 dim 0 : vector<24x128xf32>, i32 -> vector<24x128xf32>
    %12 = arith.subf %7, %11 : vector<24x128xf32>
    %13 = math.absf %12 : vector<24x128xf32>
    %c0_15 = arith.constant 0 : index
    %14 = memref.load %arg2[%c0_15] : memref<2xf32, #tpu.memory_space<smem>>
    %15 = vector.broadcast %14 : f32 to vector<24x128xf32>
    %16 = arith.mulf %10, %15 : vector<24x128xf32>
    %c1 = arith.constant 1 : index
    %17 = memref.load %arg2[%c1] : memref<2xf32, #tpu.memory_space<smem>>
    %18 = vector.broadcast %17 : f32 to vector<24x128xf32>
    %19 = arith.mulf %13, %18 : vector<24x128xf32>
    %20 = arith.addf %16, %19 : vector<24x128xf32>
    %21 = vector.shape_cast %20 : vector<24x128xf32> to vector<1x24x128xf32>
    %c0_16 = arith.constant 0 : index
    %c0_17 = arith.constant 0 : index
    %c0_18 = arith.constant 0 : index
    %22 = vector.load %arg3[%c0_16, %c0_17, %c0_18] : memref<1x24x128xf32, #tpu.memory_space<vmem>>, vector<1x24x128xf32>
    tpu.vector_store %arg3[%c0_16, %c0_17, %c0_18], %21 {strides = array<i32>} : memref<1x24x128xf32, #tpu.memory_space<vmem>>, vector<1x24x128xf32>,
    return
  }
  func.func @transform_0(%arg0: i32) -> (i32, i32, i32) {
    %c0_i32 = arith.constant 0 : i32
    %c0_i32_0 = arith.constant 0 : i32
    %c0_i32_1 = arith.constant 0 : i32
    return %arg0, %c0_i32, %c0_i32_0 : i32, i32, i32
  }
  func.func @transform_1(%arg0: i32) -> i32 {
    %c0_i32 = arith.constant 0 : i32
    %c0_i32_0 = arith.constant 0 : i32
    return %c0_i32 : i32
  }
  func.func @transform_2(%arg0: i32) -> (i32, i32, i32) {
    %c0_i32 = arith.constant 0 : i32
    %c0_i32_0 = arith.constant 0 : i32
    %c0_i32_1 = arith.constant 0 : i32
    return %arg0, %c0_i32, %c0_i32_0 : i32, i32, i32
  }
}

module attributes {stable_mosaic.version = 11 : i64} {
  func.func @_minmax_kernel(%arg0: i32, %arg1: memref<1x16x16xf32, #tpu.memory_space<vmem>>, %arg2: memref<1x2x128xf32, #tpu.memory_space<vmem>>, %arg3: memref<1x24x128xf32, #tpu.memory_space<vmem>>) attributes {dimension_semantics = [#tpu.dimension_semantics<parallel>], iteration_bounds = array<i64: 2>, scalar_prefetch = 0 : i64, scratch_operands = 1 : i64, tpu.core_type = #tpu.core_type<tc>, window_params = [{transform_indices = @transform_0, window_bounds = array<i64: 1, 16, 16>}, {transform_indices = @transform_1, window_bounds = array<i64: 1, 2, 128>}]} {
    %c0 = arith.constant 0 : index
    %c0_0 = arith.constant 0 : index
    %c0_1 = arith.constant 0 : index
    %0 = vector.load %arg1[%c0, %c0_0, %c0_1] : memref<1x16x16xf32, #tpu.memory_space<vmem>>, vector<1x16x16xf32>
    %c0_2 = arith.constant 0 : index
    %c0_3 = arith.constant 0 : index
    %c0_4 = arith.constant 0 : index
    %1 = vector.load %arg3[%c0_2, %c0_3, %c0_4] : memref<1x24x128xf32, #tpu.memory_space<vmem>>, vector<1x16x16xf32>
    tpu.vector_store %arg3[%c0_2, %c0_3, %c0_4], %0 {strides = array<i32>} : memref<1x24x128xf32, #tpu.memory_space<vmem>>, vector<1x16x16xf32>,
    %cst = arith.constant 0.000000e+00 : f32
    %2 = vector.broadcast %cst : f32 to vector<1x24x112xf32>
    %c0_5 = arith.constant 0 : index
    %c0_6 = arith.constant 0 : index
    %c16 = arith.constant 16 : index
    %3 = vector.load %arg3[%c0_5, %c0_6, %c16] : memref<1x24x128xf32, #tpu.memory_space<vmem>>, vector<1x24x112xf32>
    tpu.vector_store %arg3[%c0_5, %c0_6, %c16], %2 {strides = array<i32>} : memref<1x24x128xf32, #tpu.memory_space<vmem>>, vector<1x24x112xf32>,
    %cst_7 = arith.constant 0.000000e+00 : f32
    %4 = vector.broadcast %cst_7 : f32 to vector<1x8x128xf32>
    %c0_8 = arith.constant 0 : index
    %c16_9 = arith.constant 16 : index
    %c0_10 = arith.constant 0 : index
    %5 = vector.load %arg3[%c0_8, %c16_9, %c0_10] : memref<1x24x128xf32, #tpu.memory_space<vmem>>, vector<1x8x128xf32>
    tpu.vector_store %arg3[%c0_8, %c16_9, %c0_10], %4 {strides = array<i32>} : memref<1x24x128xf32, #tpu.memory_space<vmem>>, vector<1x8x128xf32>,
    %c0_11 = arith.constant 0 : index
    %c0_12 = arith.constant 0 : index
    %c0_13 = arith.constant 0 : index
    %6 = vector.load %arg3[%c0_11, %c0_12, %c0_13] : memref<1x24x128xf32, #tpu.memory_space<vmem>>, vector<1x24x128xf32>
    %7 = vector.shape_cast %6 : vector<1x24x128xf32> to vector<24x128xf32>
    %c1_i32 = arith.constant 1 : i32
    %8 = tpu.dynamic_rotate %7 by %c1_i32 dim 1 : vector<24x128xf32>, i32 -> vector<24x128xf32>
    %9 = arith.subf %7, %8 : vector<24x128xf32>
    %10 = math.absf %9 : vector<24x128xf32>
    %c1_i32_14 = arith.constant 1 : i32
    %11 = tpu.dynamic_rotate %7 by %c1_i32_14 dim 0 : vector<24x128xf32>, i32 -> vector<24x128xf32>
    %12 = arith.subf %7, %11 : vector<24x128xf32>
    %13 = math.absf %12 : vector<24x128xf32>
    %cst_15 = arith.constant dense<0xFF800000> : vector<128xf32>
    %14 = vector.multi_reduction <maximumf>, %10, %cst_15 [0] : vector<24x128xf32> to vector<128xf32>
    %15 = vector.shape_cast %14 : vector<128xf32> to vector<1x128xf32>
    %cst_16 = arith.constant dense<0xFF800000> : vector<128xf32>
    %16 = vector.multi_reduction <maximumf>, %13, %cst_16 [0] : vector<24x128xf32> to vector<128xf32>
    %17 = vector.shape_cast %16 : vector<128xf32> to vector<1x128xf32>
    %18 = tpu.concatenate %15, %17 in 0 : vector<1x128xf32>, vector<1x128xf32> -> vector<2x128xf32>
    %c0_17 = arith.constant 0 : index
    %c0_18 = arith.constant 0 : index
    %c0_19 = arith.constant 0 : index
    %19 = vector.load %arg2[%c0_17, %c0_18, %c0_19] : memref<1x2x128xf32, #tpu.memory_space<vmem>>, vector<1x2x128xf32>
    %20 = vector.shape_cast %19 : vector<1x2x128xf32> to vector<2x128xf32>
    %21 = vector.shape_cast %18 : vector<2x128xf32> to vector<1x2x128xf32>
    tpu.vector_store %arg2[%c0_17, %c0_18, %c0_19], %21 {strides = array<i32>} : memref<1x2x128xf32, #tpu.memory_space<vmem>>, vector<1x2x128xf32>,
    return
  }
  func.func @transform_0(%arg0: i32) -> (i32, i32, i32) {
    %c0_i32 = arith.constant 0 : i32
    %c0_i32_0 = arith.constant 0 : i32
    %c0_i32_1 = arith.constant 0 : i32
    return %arg0, %c0_i32, %c0_i32_0 : i32, i32, i32
  }
  func.func @transform_1(%arg0: i32) -> (i32, i32, i32) {
    %c0_i32 = arith.constant 0 : i32
    %c0_i32_0 = arith.constant 0 : i32
    %c0_i32_1 = arith.constant 0 : i32
    return %arg0, %c0_i32, %c0_i32_0 : i32, i32, i32
  }
}

</mosaic_0001>

<llo_original>
// kernel: sobel_layer.3
$region0: #{sobel_layer.3}
  #allocation0 [shape = 'u32[]', space=smem, size = 0x4, offset = 0x4, fixed_abs, tag = 'smem constant byte address 0x4 - core index']
  #allocation1 [shape = 'u32[144,128]{1,0:T(1,128)}', space=vmem, size = 0x12000, scoped, tag = 'internal scratch']
  #allocation2 [shape = 'f32[1,24,128]{2,1,0:T(8,128)}', space=vmem, size = 0x3000, scoped, tag = 'scratch operand']
  %s0 = inlined_call_operand.vmem [shape: f32[2,16,16], index: 0, kind: input, shape index: {}]
  %s1 = inlined_call_operand.vmem [shape: f32[2], index: 1, kind: input, shape index: {}]
  %s2 = inlined_call_operand.vmem [shape: f32[2,24,128], index: 2, kind: output, shape index: {}]
  %s3 = sld [smem:[#allocation0]]
  $region45: #{sobel_layer.3} parent=0
    _
  %s5 = ssub.s32 1, %s3
  %s6 = scalar_select 0, %s5, %s3
  $region1: #{sobel_layer.3} parent=0
    #allocation3 [shape = 'u8[512]{0}', space=smem, size = 0x200, scoped, tag = 'input window, operand 1, single buffered']
    #allocation4 [shape = 's32[2]{0}', space=sflag, size = 0x8, scoped, tag = 'scoped memory for sobel_layer.3']
    %7 = vsyncpa [#allocation4], 0
    loop: start=0, step=1, limit=4
    $region2: #{sobel_layer.3} parent=1 // loop_pre_header
      _
    $region3: #{sobel_layer.3} parent=1 // loop_header
      %s9 = sphi 0, %s13
      %p10 = scmp.ge.s32.totalorder %s9, 4
      %s19 = sphi 0, %s21
      %s22 = sphi 0, %s19
      %s23 = sphi 0, %s22
      %s39 = sphi 0, %s23
      %s43 = sphi 0, %s43
      %s45 = sphi 0, %s43
      %s46 = sphi 0, %s45
      %s60 = sphi 0, %s46
      %s66 = sphi 0, %s68
      %s69 = sphi 0, %s66
      %s70 = sphi 0, %s69
      %s86 = sphi 0, %s70
    $region4: #{sobel_layer.3} parent=1 // loop_header_branch
      %12 = sbr.rel (%p10) target = $region8
    $region5: #{sobel_layer.3} parent=1 // loop_body
      %s14 = ssub.s32 %s9, 1
      %s15 = ssub.s32 %s9, 2
      %s16 = sadd.s32 %s9, 1
      %s17 = ssub.s32 %s9, %s16
      %p18 = scmp.eq.s32.totalorder %s17, 0
      %s20 = sadd.s32 %s19, 1
      %s21 = scalar_select %p18, %s19, %s20
      %p24 = pneg %p18
      %p25 = scmp.eq.s32.totalorder %s9, 1
      %p26 = por %p24, %p25
      %p27 = scmp.ne.s32.totalorder %s19, %s22
      %p28 = scmp.eq.s32.totalorder %s9, 0
      %p29 = por %p27, %p28
      %p30 = scmp.ne.s32.totalorder %s19, %s22
      %p31 = scmp.eq.s32.totalorder %s14, 1
      %p32 = por %p30, %p31
      %p33 = scmp.ne.s32.totalorder %s22, %s23
      %p34 = scmp.eq.s32.totalorder %s14, 0
      %p35 = por %p33, %p34
      %p36 = scmp.ne.s32.totalorder %s22, %s23
      %p37 = scmp.eq.s32.totalorder %s15, 1
      %p38 = por %p36, %p37
      %p40 = scmp.ne.s32.totalorder %s23, %s39
      %p41 = scmp.eq.s32.totalorder %s15, 0
      %p42 = por %p40, %p41
      %s44 = sadd.s32 %s43, 1
      %p47 = scmp.eq.s32.totalorder %s9, 1
      %p48 = scmp.ne.s32.totalorder %s43, %s45
      %p49 = scmp.eq.s32.totalorder %s9, 0
      %p50 = por %p48, %p49
      %p51 = scmp.ne.s32.totalorder %s43, %s45
      %p52 = scmp.eq.s32.totalorder %s14, 1
      %p53 = por %p51, %p52
      %p54 = scmp.ne.s32.totalorder %s45, %s46
      %p55 = scmp.eq.s32.totalorder %s14, 0
      %p56 = por %p54, %p55
      %p57 = scmp.ne.s32.totalorder %s45, %s46
      %p58 = scmp.eq.s32.totalorder %s15, 1
      %p59 = por %p57, %p58
      %p61 = scmp.ne.s32.totalorder %s46, %s60
      %p62 = scmp.eq.s32.totalorder %s15, 0
      %p63 = por %p61, %p62
      %s64 = ssub.s32 %s9, %s16
      %p65 = scmp.eq.s32.totalorder %s64, 0
      %s67 = sadd.s32 %s66, 1
      %s68 = scalar_select %p65, %s66, %s67
      %p71 = pneg %p65
      %p72 = scmp.eq.s32.totalorder %s9, 1
      %p73 = por %p71, %p72
      %p74 = scmp.ne.s32.totalorder %s66, %s69
      %p75 = scmp.eq.s32.totalorder %s9, 0
      %p76 = por %p74, %p75
      %p77 = scmp.ne.s32.totalorder %s66, %s69
      %p78 = scmp.eq.s32.totalorder %s14, 1
      %p79 = por %p77, %p78
      %p80 = scmp.ne.s32.totalorder %s69, %s70
      %p81 = scmp.eq.s32.totalorder %s14, 0
      %p82 = por %p80, %p81
      %p83 = scmp.ne.s32.totalorder %s69, %s70
      %p84 = scmp.eq.s32.totalorder %s15, 1
      %p85 = por %p83, %p84
      %p87 = scmp.ne.s32.totalorder %s70, %s86
      %p88 = scmp.eq.s32.totalorder %s15, 0
      %p89 = por %p87, %p88
      %p90 = scmp.le.s32.totalorder 1, %s9
      %p91 = scmp.lt.s32.totalorder %s9, 3
      %p92 = pnand %p90, %p91
      %p93 = pneg %p92
      // Predicated region
      $region9: #{sobel_layer.3} parent=5 // pred_check
        _
      $region10: #{sobel_layer.3} parent=5 // pred_check_branch
        %95 = sbr.rel (%p92) target = $region12
      $region11: #{sobel_layer.3} parent=5 // pred_region
        %s96 = ssub.s32 %s9, 1
        // Predicated region
        $region13: #{sobel_layer.3} parent=11 // pred_check
          %p97 = pneg %p56
        $region14: #{sobel_layer.3} parent=11 // pred_check_branch
          %99 = sbr.rel (%p97) target = $region16
        $region15: #{sobel_layer.3} parent=11 // pred_region
          %s101 = ssub.s32 16, 16
          %102 = vsyncadd [#allocation4], %s101
          %s104 = sshll.u32 %s1, 4
          %s105 = int_to_ptr.vmem [resolvable:$true] %s104
          %107 = dma.vmem_to_smem %s105, 16, [#allocation3], [#allocation4]
        $region16: #{sobel_layer.3} parent=11 // pred_fallthru
          _
      $region12: #{sobel_layer.3} parent=5 // pred_fallthru
        _
      %p108 = scmp.lt.s32.totalorder %s9, 2
      // Predicated region
      $region17: #{sobel_layer.3} parent=5 // pred_check
        %p109 = pneg %p108
      $region18: #{sobel_layer.3} parent=5 // pred_check_branch
        %111 = sbr.rel (%p109) target = $region20
      $region19: #{sobel_layer.3} parent=5 // pred_region
        // Predicated region
        $region21: #{sobel_layer.3} parent=19 // pred_check
          %p112 = pneg %p29
        $region22: #{sobel_layer.3} parent=19 // pred_check_branch
          %114 = sbr.rel (%p112) target = $region24
        $region23: #{sobel_layer.3} parent=19 // pred_region
          %p115 = scmp.lt.s32.totalorder %s9, 1
          %s116 = scalar_select %p115, %s9, 1
          %s117 = smul.addr %s116, 2
          %s118 = smul.addr %s117, 8
          %s119 = scalar_lea.vmem %s0, %s118
        $region24: #{sobel_layer.3} parent=19 // pred_fallthru
          _
      $region20: #{sobel_layer.3} parent=5 // pred_fallthru
        _
      %p120 = scmp.le.s32.totalorder 1, %s9
      %p121 = scmp.lt.s32.totalorder %s9, 3
      %p122 = pnand %p120, %p121
      %p123 = pneg %p122
      // Predicated region
      $region25: #{sobel_layer.3} parent=5 // pred_check
        _
      $region26: #{sobel_layer.3} parent=5 // pred_check_branch
        %125 = sbr.rel (%p122) target = $region28
      $region27: #{sobel_layer.3} parent=5 // pred_region
        %s126 = ssub.s32 %s9, 1
        // Predicated region
        $region29: #{sobel_layer.3} parent=27 // pred_check
          %p127 = pneg %p56
        $region30: #{sobel_layer.3} parent=27 // pred_check_branch
          %129 = sbr.rel (%p127) target = $region32
        $region31: #{sobel_layer.3} parent=27 // pred_region
          %130 = dma.done [#allocation4], 16
        $region32: #{sobel_layer.3} parent=27 // pred_fallthru
          _
        %131 = sfence
        %p132 = scmp.lt.s32.totalorder %s14, 1
        %s133 = scalar_select %p132, %s14, 1
        %s134 = smul.addr %s133, 2
        %s135 = smul.addr %s134, 8
        %s136 = scalar_lea.vmem %s0, %s135
        %p137 = pneg %p35
        %p138 = pneg %p32
        %p139 = pneg %p56
        %p140 = pneg %p53
        %p141 = pneg %p82
        %p142 = pneg %p79
        %p143 = scmp.lt.s32.totalorder %s14, 1
        %s144 = scalar_select %p143, %s14, 1
        %s145 = smul.addr %s144, 3
        %s146 = smul.addr %s145, 8
        %s147 = scalar_lea.vmem %s2, %s146
        %p148 = scmp.lt.s32.totalorder %s14, 1
        %s149 = scalar_select %p148, %s14, 1
        %s150 = smul.addr %s149, 2
        %s151 = smul.addr %s150, 8
        %s152 = scalar_lea.vmem %s0, %s151
        %p153 = scmp.lt.s32.totalorder %s14, 1
        %s154 = scalar_select %p153, %s14, 1
        %s155 = smul.addr %s154, 3
        %s156 = smul.addr %s155, 8
        %s157 = scalar_lea.vmem %s2, %s156
        %v158 = vld [vmem:[%s152] sm:$0xff]
        %v159 = vld [vmem:[%s152 + $0x8] sm:$0xff]
        %vm160 = vcmask 130048
        %161 = vst.msk [vmem:[#allocation2] sm:$0xff] %vm160, %v158
        %162 = vst.msk [vmem:[#allocation2 + $0x8] sm:$0xff] %vm160, %v159
        %vm163 = vcmask 1047680
        %164 = vst.msk [vmem:[#allocation2] sm:$0xff] %vm163, 0.0
        %165 = vst.msk [vmem:[#allocation2 + $0x8] sm:$0xff] %vm163, 0.0
        %166 = vst.msk [vmem:[#allocation2 + $0x10] sm:$0xff] %vm163, 0.0
        %167 = vst [vmem:[#allocation2 + $0x10] sm:$0xff] 0.0
        %v168 = vld [vmem:[#allocation2] sm:$0xff]
        %v169 = vld [vmem:[#allocation2 + $0x8] sm:$0xff]
        %v170 = vld [vmem:[#allocation2 + $0x10] sm:$0xff]
        %171 = vrot.lane.b32.xlu0 %v168, 1
        %v172 = vpop.permute.xlu0 %171
        %173 = vrot.lane.b32.xlu0 %v169, 1
        %v174 = vpop.permute.xlu0 %173
        %175 = vrot.lane.b32.xlu0 %v170, 1
        %v176 = vpop.permute.xlu0 %175
        %v177 = vsub.f32 %v168, %v172
        %v178 = vsub.f32 %v169, %v174
        %v179 = vsub.f32 %v170, %v176
        %v180 = vand.u32 2147483647, %v177
        %v181 = vand.u32 2147483647, %v178
        %v182 = vand.u32 2147483647, %v179
        %v183 = vrot.slane %v168, 7
        %v184 = vrot.slane %v169, 7
        %v185 = vrot.slane %v170, 7
        %v186 = vlaneseq
        %v187 = vshrl.u32 %v186, 7
        %vm188 = vcmp.lt.s32.totalorder %v187, 1
        %v189 = vsel %vm188, %v184, %v185
        %v190 = vsel %vm188, %v183, %v184
        %v191 = vsel %vm188, %v185, %v183
        %v192 = vsub.f32 %v168, %v191
        %v193 = vsub.f32 %v169, %v190
        %v194 = vsub.f32 %v170, %v189
        %v195 = vand.u32 2147483647, %v192
        %v196 = vand.u32 2147483647, %v193
        %v197 = vand.u32 2147483647, %v194
        %s198 = sld [smem:[#allocation3]]
        %v199 = vstv %s198
        %v200 = vmul.f32 %v180, %v199
        %v201 = vmul.f32 %v181, %v199
        %v202 = vmul.f32 %v182, %v199
        %s203 = sld [smem:[#allocation3 + $0x1]]
        %v204 = vstv %s203
        %v205 = vmul.f32 %v195, %v204
        %v206 = vmul.f32 %v196, %v204
        %v207 = vmul.f32 %v197, %v204
        %v208 = vadd.f32 %v200, %v205
        %v209 = vadd.f32 %v201, %v206
        %v210 = vadd.f32 %v202, %v207
        %211 = vst [vmem:[%s157] sm:$0xff] %v208
        %212 = vst [vmem:[%s157 + $0x8] sm:$0xff] %v209
        %213 = vst [vmem:[%s157 + $0x10] sm:$0xff] %v210
        %p214 = scmp.lt.s32.totalorder %s14, 1
        %s215 = scalar_select %p214, %s14, 1
        %s216 = smul.addr %s215, 3
        %s217 = smul.addr %s216, 8
        %s218 = scalar_lea.vmem %s2, %s217
        // Predicated region
        $region33: #{sobel_layer.3} parent=27 // pred_check
          %p219 = pneg %p79
        $region34: #{sobel_layer.3} parent=27 // pred_check_branch
          %221 = sbr.rel (%p219) target = $region36
        $region35: #{sobel_layer.3} parent=27 // pred_region
          _
        $region36: #{sobel_layer.3} parent=27 // pred_fallthru
          _
      $region28: #{sobel_layer.3} parent=5 // pred_fallthru
        _
      %p222 = scmp.le.s32.totalorder 2, %s9
      // Predicated region
      $region37: #{sobel_layer.3} parent=5 // pred_check
        %p223 = pneg %p222
      $region38: #{sobel_layer.3} parent=5 // pred_check_branch
        %225 = sbr.rel (%p223) target = $region40
      $region39: #{sobel_layer.3} parent=5 // pred_region
        %s226 = ssub.s32 %s9, 2
        // Predicated region
        $region41: #{sobel_layer.3} parent=39 // pred_check
          %p227 = pneg %p85
        $region42: #{sobel_layer.3} parent=39 // pred_check_branch
          %229 = sbr.rel (%p227) target = $region44
        $region43: #{sobel_layer.3} parent=39 // pred_region
          %p230 = scmp.lt.s32.totalorder %s15, 1
          %s231 = scalar_select %p230, %s15, 1
          %s232 = smul.addr %s231, 3
          %s233 = smul.addr %s232, 8
          %s234 = scalar_lea.vmem %s2, %s233
        $region44: #{sobel_layer.3} parent=39 // pred_fallthru
          _
      $region40: #{sobel_layer.3} parent=5 // pred_fallthru
        _
    $region6: #{sobel_layer.3} parent=1 // loop_footer
      %s13 = sadd.s32 1, %s9
    $region7: #{sobel_layer.3} parent=1 // loop_footer_branch
      %8 = sbr.rel target = $region3
    $region8: #{sobel_layer.3} parent=1 // loop_exit
      _
    %235 = vsyncpa [#allocation4], 1
    %s236 = scalar_lea.sflag [#allocation4], 1
    %237 = vsyncpa %s236, 1

// kernel: sobel_layer.2
$region0: #{sobel_layer.2}
  #allocation0 [shape = 'u32[]', space=smem, size = 0x4, offset = 0x4, fixed_abs, tag = 'smem constant byte address 0x4 - core index']
  #allocation1 [shape = 'u32[144,128]{1,0:T(1,128)}', space=vmem, size = 0x12000, scoped, tag = 'internal scratch']
  #allocation2 [shape = 'f32[1,24,128]{2,1,0:T(8,128)}', space=vmem, size = 0x3000, scoped, tag = 'scratch operand']
  %s0 = inlined_call_operand.hbm [shape: f32[2,16,16], index: 0, kind: input, shape index: {}]
  %s1 = inlined_call_operand.vmem [shape: f32[2,2,128], index: 1, kind: output, shape index: {}]
  %s2 = sld [smem:[#allocation0]]
  $region41: #{sobel_layer.2} parent=0
    _
  %s4 = ssub.s32 1, %s2
  %s5 = scalar_select 0, %s4, %s2
  $region1: #{sobel_layer.2} parent=0
    #allocation3 [shape = 'u8[16384]{0}', space=vmem, size = 0x4000, scoped, tag = 'input window, operand 0']
    #allocation4 [shape = 's32[2]{0}', space=sflag, size = 0x8, scoped, tag = 'scoped memory for sobel_layer.2']
    %6 = vsyncpa [#allocation4], 0
    %s7 = scalar_lea.sflag [#allocation4], 1
    %8 = vsyncpa %s7, 0
    loop: start=0, step=1, limit=4
    $region2: #{sobel_layer.2} parent=1 // loop_pre_header
      _
    $region3: #{sobel_layer.2} parent=1 // loop_header
      %s10 = sphi 0, %s14
      %p11 = scmp.ge.s32.totalorder %s10, 4
      %s20 = sphi 0, %s22
      %s23 = sphi 0, %s20
      %s24 = sphi 0, %s23
      %s40 = sphi 0, %s24
      %s46 = sphi 0, %s48
      %s49 = sphi 0, %s46
      %s50 = sphi 0, %s49
      %s66 = sphi 0, %s50
    $region4: #{sobel_layer.2} parent=1 // loop_header_branch
      %13 = sbr.rel (%p11) target = $region8
    $region5: #{sobel_layer.2} parent=1 // loop_body
      %s15 = ssub.s32 %s10, 1
      %s16 = ssub.s32 %s10, 2
      %s17 = sadd.s32 %s10, 1
      %s18 = ssub.s32 %s10, %s17
      %p19 = scmp.eq.s32.totalorder %s18, 0
      %s21 = sadd.s32 %s20, 1
      %s22 = scalar_select %p19, %s20, %s21
      %p25 = pneg %p19
      %p26 = scmp.eq.s32.totalorder %s10, 1
      %p27 = por %p25, %p26
      %p28 = scmp.ne.s32.totalorder %s20, %s23
      %p29 = scmp.eq.s32.totalorder %s10, 0
      %p30 = por %p28, %p29
      %p31 = scmp.ne.s32.totalorder %s20, %s23
      %p32 = scmp.eq.s32.totalorder %s15, 1
      %p33 = por %p31, %p32
      %p34 = scmp.ne.s32.totalorder %s23, %s24
      %p35 = scmp.eq.s32.totalorder %s15, 0
      %p36 = por %p34, %p35
      %p37 = scmp.ne.s32.totalorder %s23, %s24
      %p38 = scmp.eq.s32.totalorder %s16, 1
      %p39 = por %p37, %p38
      %p41 = scmp.ne.s32.totalorder %s24, %s40
      %p42 = scmp.eq.s32.totalorder %s16, 0
      %p43 = por %p41, %p42
      %s44 = ssub.s32 %s10, %s17
      %p45 = scmp.eq.s32.totalorder %s44, 0
      %s47 = sadd.s32 %s46, 1
      %s48 = scalar_select %p45, %s46, %s47
      %p51 = pneg %p45
      %p52 = scmp.eq.s32.totalorder %s10, 1
      %p53 = por %p51, %p52
      %p54 = scmp.ne.s32.totalorder %s46, %s49
      %p55 = scmp.eq.s32.totalorder %s10, 0
      %p56 = por %p54, %p55
      %p57 = scmp.ne.s32.totalorder %s46, %s49
      %p58 = scmp.eq.s32.totalorder %s15, 1
      %p59 = por %p57, %p58
      %p60 = scmp.ne.s32.totalorder %s49, %s50
      %p61 = scmp.eq.s32.totalorder %s15, 0
      %p62 = por %p60, %p61
      %p63 = scmp.ne.s32.totalorder %s49, %s50
      %p64 = scmp.eq.s32.totalorder %s16, 1
      %p65 = por %p63, %p64
      %p67 = scmp.ne.s32.totalorder %s50, %s66
      %p68 = scmp.eq.s32.totalorder %s16, 0
      %p69 = por %p67, %p68
      %p70 = scmp.le.s32.totalorder 1, %s10
      %p71 = scmp.lt.s32.totalorder %s10, 3
      %p72 = pnand %p70, %p71
      %p73 = pneg %p72
      // Predicated region
      $region9: #{sobel_layer.2} parent=5 // pred_check
        _
      $region10: #{sobel_layer.2} parent=5 // pred_check_branch
        %75 = sbr.rel (%p72) target = $region12
      $region11: #{sobel_layer.2} parent=5 // pred_region
        %s76 = ssub.s32 %s10, 1
      $region12: #{sobel_layer.2} parent=5 // pred_fallthru
        _
      %p77 = scmp.lt.s32.totalorder %s10, 2
      // Predicated region
      $region13: #{sobel_layer.2} parent=5 // pred_check
        %p78 = pneg %p77
      $region14: #{sobel_layer.2} parent=5 // pred_check_branch
        %80 = sbr.rel (%p78) target = $region16
      $region15: #{sobel_layer.2} parent=5 // pred_region
        // Predicated region
        $region17: #{sobel_layer.2} parent=15 // pred_check
          %p81 = pneg %p30
        $region18: #{sobel_layer.2} parent=15 // pred_check_branch
          %83 = sbr.rel (%p81) target = $region20
        $region19: #{sobel_layer.2} parent=15 // pred_region
          %s84 = sand.u32 %s20, 1
          %s85 = scalar_lea.sflag [#allocation4], %s84
          %s86 = sand.u32 %s20, 1
          %s87 = smul.addr %s86, 16
          %s88 = scalar_lea.vmem [#allocation3], %s87
          %s90 = ssub.s32 256, 256
          %91 = vsyncadd %s85, %s90
          %s92 = smul.addr %s10, 2
          %s93 = smul.addr %s92, 128
          %s94 = scalar_lea.hbm %s0, %s93
          %s95 = sshll.u32 %s88, 4
          %s96 = int_to_ptr.vmem [resolvable:$true] %s95
          %101 = dma.hbm_to_vmem [thread:$0]  %s94, 256, %s96, %s85, 128, 128, 8
        $region20: #{sobel_layer.2} parent=15 // pred_fallthru
          _
      $region16: #{sobel_layer.2} parent=5 // pred_fallthru
        _
      %p102 = scmp.le.s32.totalorder 1, %s10
      %p103 = scmp.lt.s32.totalorder %s10, 3
      %p104 = pnand %p102, %p103
      %p105 = pneg %p104
      // Predicated region
      $region21: #{sobel_layer.2} parent=5 // pred_check
        _
      $region22: #{sobel_layer.2} parent=5 // pred_check_branch
        %107 = sbr.rel (%p104) target = $region24
      $region23: #{sobel_layer.2} parent=5 // pred_region
        %s108 = ssub.s32 %s10, 1
        %s109 = sand.u32 %s23, 1
        %s110 = scalar_lea.sflag [#allocation4], %s109
        %s111 = sand.u32 %s23, 1
        %s112 = smul.addr %s111, 16
        %s113 = scalar_lea.vmem [#allocation3], %s112
        // Predicated region
        $region25: #{sobel_layer.2} parent=23 // pred_check
          %p114 = pneg %p36
        $region26: #{sobel_layer.2} parent=23 // pred_check_branch
          %116 = sbr.rel (%p114) target = $region28
        $region27: #{sobel_layer.2} parent=23 // pred_region
          %117 = dma.done %s110, 256
        $region28: #{sobel_layer.2} parent=23 // pred_fallthru
          _
        %s118 = sand.u32 %s23, 1
        %s119 = scalar_lea.sflag [#allocation4], %s118
        %s120 = sand.u32 %s23, 1
        %s121 = smul.addr %s120, 16
        %s122 = scalar_lea.vmem [#allocation3], %s121
        %p123 = pneg %p36
        %p124 = pneg %p33
        %p125 = pneg %p62
        %p126 = pneg %p59
        %p127 = scmp.lt.s32.totalorder %s15, 1
        %s128 = scalar_select %p127, %s15, 1
        %s129 = smul.addr %s128, 2
        %s130 = scalar_lea.vmem %s1, %s129
        %p131 = scmp.lt.s32.totalorder %s15, 1
        %s132 = scalar_select %p131, %s15, 1
        %s133 = smul.addr %s132, 2
        %s134 = scalar_lea.vmem %s1, %s133
        %v135 = vld [vmem:[%s113] sm:$0xff]
        %v136 = vld [vmem:[%s113 + $0x8] sm:$0xff]
        %vm137 = vcmask 130048
        %138 = vst.msk [vmem:[#allocation2] sm:$0xff] %vm137, %v135
        %139 = vst.msk [vmem:[#allocation2 + $0x8] sm:$0xff] %vm137, %v136
        %vm140 = vcmask 1047680
        %141 = vst.msk [vmem:[#allocation2] sm:$0xff] %vm140, 0.0
        %142 = vst.msk [vmem:[#allocation2 + $0x8] sm:$0xff] %vm140, 0.0
        %143 = vst.msk [vmem:[#allocation2 + $0x10] sm:$0xff] %vm140, 0.0
        %144 = vst [vmem:[#allocation2 + $0x10] sm:$0xff] 0.0
        %v145 = vld [vmem:[#allocation2] sm:$0xff]
        %v146 = vld [vmem:[#allocation2 + $0x8] sm:$0xff]
        %v147 = vld [vmem:[#allocation2 + $0x10] sm:$0xff]
        %148 = vrot.lane.b32.xlu0 %v145, 1
        %v149 = vpop.permute.xlu0 %148
        %150 = vrot.lane.b32.xlu0 %v146, 1
        %v151 = vpop.permute.xlu0 %150
        %152 = vrot.lane.b32.xlu0 %v147, 1
        %v153 = vpop.permute.xlu0 %152
        %v154 = vsub.f32 %v145, %v149
        %v155 = vsub.f32 %v146, %v151
        %v156 = vsub.f32 %v147, %v153
        %v157 = vand.u32 2147483647, %v154
        %v158 = vand.u32 2147483647, %v155
        %v159 = vand.u32 2147483647, %v156
        %v160 = vrot.slane %v145, 7
        %v161 = vrot.slane %v146, 7
        %v162 = vrot.slane %v147, 7
        %v163 = vlaneseq
        %v164 = vshrl.u32 %v163, 7
        %vm165 = vcmp.lt.s32.totalorder %v164, 1
        %v166 = vsel %vm165, %v161, %v162
        %v167 = vsel %vm165, %v160, %v161
        %v168 = vsel %vm165, %v162, %v160
        %v169 = vsub.f32 %v145, %v168
        %v170 = vsub.f32 %v146, %v167
        %v171 = vsub.f32 %v147, %v166
        %v172 = vand.u32 2147483647, %v169
        %v173 = vand.u32 2147483647, %v170
        %v174 = vand.u32 2147483647, %v171
        %v175 = vmax.f32 %v157, %v158
        %v176 = vmax.f32 %v175, %v159
        %v177 = vrot.slane %v176, 4
        %v178 = vmax.f32 %v176, %v177
        %v179 = vrot.slane %v178, 2
        %v180 = vmax.f32 %v178, %v179
        %v181 = vrot.slane %v180, 1
        %v182 = vmax.f32 %v180, %v181
        %v183 = vmax.f32 %v172, %v173
        %v184 = vmax.f32 %v183, %v174
        %v185 = vrot.slane %v184, 4
        %v186 = vmax.f32 %v184, %v185
        %v187 = vrot.slane %v186, 2
        %v188 = vmax.f32 %v186, %v187
        %v189 = vrot.slane %v188, 1
        %v190 = vmax.f32 %v188, %v189
        %vm191 = vcmask 1040384
        %v192 = vsel %vm191, %v182, %v190
        %193 = vst [vmem:[%s134] sm:$0x3] %v192
        %p194 = scmp.lt.s32.totalorder %s15, 1
        %s195 = scalar_select %p194, %s15, 1
        %s196 = smul.addr %s195, 2
        %s197 = scalar_lea.vmem %s1, %s196
        // Predicated region
        $region29: #{sobel_layer.2} parent=23 // pred_check
          %p198 = pneg %p59
        $region30: #{sobel_layer.2} parent=23 // pred_check_branch
          %200 = sbr.rel (%p198) target = $region32
        $region31: #{sobel_layer.2} parent=23 // pred_region
          _
        $region32: #{sobel_layer.2} parent=23 // pred_fallthru
          _
      $region24: #{sobel_layer.2} parent=5 // pred_fallthru
        _
      %p201 = scmp.le.s32.totalorder 2, %s10
      // Predicated region
      $region33: #{sobel_layer.2} parent=5 // pred_check
        %p202 = pneg %p201
      $region34: #{sobel_layer.2} parent=5 // pred_check_branch
        %204 = sbr.rel (%p202) target = $region36
      $region35: #{sobel_layer.2} parent=5 // pred_region
        %s205 = ssub.s32 %s10, 2
        // Predicated region
        $region37: #{sobel_layer.2} parent=35 // pred_check
          %p206 = pneg %p65
        $region38: #{sobel_layer.2} parent=35 // pred_check_branch
          %208 = sbr.rel (%p206) target = $region40
        $region39: #{sobel_layer.2} parent=35 // pred_region
          %p209 = scmp.lt.s32.totalorder %s16, 1
          %s210 = scalar_select %p209, %s16, 1
          %s211 = smul.addr %s210, 2
          %s212 = scalar_lea.vmem %s1, %s211
        $region40: #{sobel_layer.2} parent=35 // pred_fallthru
          _
      $region36: #{sobel_layer.2} parent=5 // pred_fallthru
        _
    $region6: #{sobel_layer.2} parent=1 // loop_footer
      %s14 = sadd.s32 1, %s10
    $region7: #{sobel_layer.2} parent=1 // loop_footer_branch
      %9 = sbr.rel target = $region3
    $region8: #{sobel_layer.2} parent=1 // loop_exit
      _
    %213 = vsyncpa [#allocation4], 1
    %s214 = scalar_lea.sflag [#allocation4], 1
    %215 = vsyncpa %s214, 1

</llo_original>
